<compile_context>
chip_gen: v7x
topology: tpu7x:2x2x1
jax: 0.10.0
libtpu: 0.0.40
codegen_flags: <defaults>
</compile_context>

<pallas_src>
import jax
import jax.numpy as jnp
from jax.experimental import pallas as pl
from jax.experimental.pallas import tpu as pltpu

_MiB = 1024 * 1024
_UNROLLED_CHANNEL_LIMIT = 32


def _argmax_kernel(x_ref, o_ref):
    # x_ref: (C, S_TILE, 128) block in VMEM; o_ref: (S_TILE, 128) float32 block.
    c = x_ref.shape[0]
    run_max = x_ref[0]                                        # dense (S_TILE, 128)
    run_arg = jnp.zeros(run_max.shape, dtype=jnp.float32)     # index 0 so far

    if c <= _UNROLLED_CHANNEL_LIMIT:
        # Small class count: fully unrolled streaming reduction
        # (1 compare + 2 selects per channel, O(tile) live vregs).
        for k in range(1, c):
            xk = x_ref[k]
            upd = xk > run_max                                # strict '>' => first match wins
            run_max = jnp.where(upd, xk, run_max)
            run_arg = jnp.where(upd, jnp.float32(k), run_arg)
    else:
        # Large class count: bounded-code-size loop over the leading (untiled) axis.
        def body(k, carry):
            m, a = carry
            xk = x_ref[k]
            upd = xk > m
            return (jnp.where(upd, xk, m),
                    jnp.where(upd, k.astype(jnp.float32), a))

        run_max, run_arg = jax.lax.fori_loop(1, c, body, (run_max, run_arg), unroll=4)

    o_ref[...] = run_arg


def _target_block_bytes():
    # Generation-aware input-block budget. v7x-class chips (detected via the smaller
    # 64 MiB VMEM) get bigger blocks so the ~0.35 us per-grid-step overhead is
    # amortized against 3.2 TB/s HBM; v5e/v6e are already near roofline at ~4 MiB.
    try:
        vmem = pltpu.get_tpu_info().vmem_capacity_bytes
    except Exception:
        vmem = None
    if vmem is not None and vmem <= 80 * _MiB:
        return 6 * _MiB
    return 4 * _MiB


def _choose_sublane_tile(b, c, nblk, itemsize):
    """Sublane-tile size S_TILE (multiple of 8, or the full extent nblk)."""
    target = _target_block_bytes()
    rows = (target // (c * 128 * itemsize)) // 8 * 8
    rows = max(8, rows)
    if nblk <= rows:
        s_tile = nblk  # full extent: always a legal block dim
        # v7x has 2 TensorCores; if batch alone can't feed both, split spatially.
        if b == 1 and nblk >= 16:
            s_tile = -(-((nblk + 1) // 2) // 8) * 8
        return s_tile
    return rows


def argmax_taker(x, take_argmax_flag=True):
    """x: (b, c, h, w). Returns (b, 1, h, w) float32 argmax over channels if flag, else x."""
    if not take_argmax_flag:
        return x  # identity path, no kernel needed

    b, c, h, w = x.shape
    hw = h * w
    nblk = pl.cdiv(hw, 128)
    hwp = nblk * 128

    x2 = x.reshape(b, c, hw)
    if hwp != hw:
        # Only a sub-128 lane pad so the (b,c,nblk,128) reshape is legal; no per-tile pad.
        x2 = jnp.pad(x2, ((0, 0), (0, 0), (0, hwp - hw)))
    x2 = x2.reshape(b, c, nblk, 128)

    itemsize = x.dtype.itemsize
    s_tile = _choose_sublane_tile(b, c, nblk, itemsize)
    n_tiles = pl.cdiv(nblk, s_tile)

    in_block_bytes = c * s_tile * 128 * itemsize
    out_block_bytes = s_tile * 128 * 4
    vmem_limit = max(2 * (in_block_bytes + out_block_bytes) + 4 * _MiB, 16 * _MiB)

    out = pl.pallas_call(
        _argmax_kernel,
        out_shape=jax.ShapeDtypeStruct((b, nblk, 128), jnp.float32),
        grid_spec=pltpu.PrefetchScalarGridSpec(
            num_scalar_prefetch=0,
            grid=(b, n_tiles),
            in_specs=[pl.BlockSpec((None, c, s_tile, 128), lambda i, j: (i, 0, j, 0))],
            out_specs=pl.BlockSpec((None, s_tile, 128), lambda i, j: (i, j, 0)),
        ),
        compiler_params=pltpu.CompilerParams(
            dimension_semantics=("parallel", "parallel"),
            vmem_limit_bytes=int(vmem_limit),
        ),
        cost_estimate=pl.CostEstimate(
            flops=int(3 * b * c * hw),
            transcendentals=0,
            bytes_accessed=int((c * itemsize + 4) * b * hw),
        ),
    )(x2)

    # Padded / ragged-block lanes contain garbage; this slice discards them.
    return out.reshape(b, hwp)[:, :hw].reshape(b, 1, h, w)


if __name__ == "__main__":
    key = jax.random.PRNGKey(0)

    # Main test: shapes implied by the module (b, c, h, w).
    b, c, h, w = 2, 4, 16, 16
    x = jax.random.normal(key, (b, c, h, w), dtype=jnp.float32)
    out = jax.block_until_ready(argmax_taker(x, take_argmax_flag=True))
    ref = jnp.argmax(x, axis=1)[:, None, :, :].astype(jnp.float32)
    assert out.shape == (b, 1, h, w)
    assert out.dtype == jnp.float32
    assert bool(jnp.all(out == ref))

    # Identity path (flag=False) — returns x unchanged.
    ident = jax.block_until_ready(argmax_taker(x, take_argmax_flag=False))
    assert bool(jnp.all(ident == x))

    # Lane-padding path: h*w not a multiple of 128.
    x2 = jax.random.normal(jax.random.PRNGKey(1), (2, 6, 20, 20), dtype=jnp.float32)
    out2 = jax.block_until_ready(argmax_taker(x2, take_argmax_flag=True))
    ref2 = jnp.argmax(x2, axis=1)[:, None, :, :].astype(jnp.float32)
    assert bool(jnp.all(out2 == ref2))

    # b == 1 spatial-split path (>=2 grid tiles, ragged last sublane block).
    x3 = jax.random.normal(jax.random.PRNGKey(2), (1, 3, 40, 64), dtype=jnp.float32)
    out3 = jax.block_until_ready(argmax_taker(x3, take_argmax_flag=True))
    ref3 = jnp.argmax(x3, axis=1)[:, None, :, :].astype(jnp.float32)
    assert bool(jnp.all(out3 == ref3))

    print("KERNEL_OK")
</pallas_src>

<mosaic_0001>
module attributes {stable_mosaic.version = 11 : i64} {
  func.func @_argmax_kernel(%arg0: i32, %arg1: i32, %arg2: memref<1x4x2x128xf32, #tpu.memory_space<vmem>>, %arg3: memref<1x2x128xf32, #tpu.memory_space<vmem>>) attributes {dimension_semantics = [#tpu.dimension_semantics<parallel>, #tpu.dimension_semantics<parallel>], iteration_bounds = array<i64: 2, 1>, scalar_prefetch = 0 : i64, scratch_operands = 0 : i64, tpu.core_type = #tpu.core_type<tc>, window_params = [{transform_indices = @transform_0, window_bounds = array<i64: 1, 4, 2, 128>}, {transform_indices = @transform_1, window_bounds = array<i64: 1, 2, 128>}]} {
    %c0 = arith.constant 0 : index
    %c0_0 = arith.constant 0 : index
    %c0_1 = arith.constant 0 : index
    %c0_2 = arith.constant 0 : index
    %0 = vector.load %arg2[%c0, %c0_0, %c0_1, %c0_2] : memref<1x4x2x128xf32, #tpu.memory_space<vmem>>, vector<1x1x2x128xf32>
    %1 = vector.shape_cast %0 : vector<1x1x2x128xf32> to vector<2x128xf32>
    %cst = arith.constant 0.000000e+00 : f32
    %2 = vector.broadcast %cst : f32 to vector<2x128xf32>
    %c0_3 = arith.constant 0 : index
    %c1 = arith.constant 1 : index
    %c0_4 = arith.constant 0 : index
    %c0_5 = arith.constant 0 : index
    %3 = vector.load %arg2[%c0_3, %c1, %c0_4, %c0_5] : memref<1x4x2x128xf32, #tpu.memory_space<vmem>>, vector<1x1x2x128xf32>
    %4 = vector.shape_cast %3 : vector<1x1x2x128xf32> to vector<2x128xf32>
    %5 = arith.cmpf ogt, %4, %1 : vector<2x128xf32>
    %6 = arith.select %5, %4, %1 : vector<2x128xi1>, vector<2x128xf32>
    %cst_6 = arith.constant 1.000000e+00 : f32
    %7 = vector.broadcast %cst_6 : f32 to vector<2x128xf32>
    %8 = arith.select %5, %7, %2 : vector<2x128xi1>, vector<2x128xf32>
    %c0_7 = arith.constant 0 : index
    %c2 = arith.constant 2 : index
    %c0_8 = arith.constant 0 : index
    %c0_9 = arith.constant 0 : index
    %9 = vector.load %arg2[%c0_7, %c2, %c0_8, %c0_9] : memref<1x4x2x128xf32, #tpu.memory_space<vmem>>, vector<1x1x2x128xf32>
    %10 = vector.shape_cast %9 : vector<1x1x2x128xf32> to vector<2x128xf32>
    %11 = arith.cmpf ogt, %10, %6 : vector<2x128xf32>
    %12 = arith.select %11, %10, %6 : vector<2x128xi1>, vector<2x128xf32>
    %cst_10 = arith.constant 2.000000e+00 : f32
    %13 = vector.broadcast %cst_10 : f32 to vector<2x128xf32>
    %14 = arith.select %11, %13, %8 : vector<2x128xi1>, vector<2x128xf32>
    %c0_11 = arith.constant 0 : index
    %c3 = arith.constant 3 : index
    %c0_12 = arith.constant 0 : index
    %c0_13 = arith.constant 0 : index
    %15 = vector.load %arg2[%c0_11, %c3, %c0_12, %c0_13] : memref<1x4x2x128xf32, #tpu.memory_space<vmem>>, vector<1x1x2x128xf32>
    %16 = vector.shape_cast %15 : vector<1x1x2x128xf32> to vector<2x128xf32>
    %17 = arith.cmpf ogt, %16, %12 : vector<2x128xf32>
    %cst_14 = arith.constant 3.000000e+00 : f32
    %18 = vector.broadcast %cst_14 : f32 to vector<2x128xf32>
    %19 = arith.select %17, %18, %14 : vector<2x128xi1>, vector<2x128xf32>
    %c0_15 = arith.constant 0 : index
    %c0_16 = arith.constant 0 : index
    %c0_17 = arith.constant 0 : index
    %20 = vector.load %arg3[%c0_15, %c0_16, %c0_17] : memref<1x2x128xf32, #tpu.memory_space<vmem>>, vector<1x2x128xf32>
    %21 = vector.shape_cast %20 : vector<1x2x128xf32> to vector<2x128xf32>
    %22 = vector.shape_cast %19 : vector<2x128xf32> to vector<1x2x128xf32>
    tpu.vector_store %arg3[%c0_15, %c0_16, %c0_17], %22 {strides = array<i32>} : memref<1x2x128xf32, #tpu.memory_space<vmem>>, vector<1x2x128xf32>,
    return
  }
  func.func @transform_0(%arg0: i32, %arg1: i32) -> (i32, i32, i32, i32) {
    %c0_i32 = arith.constant 0 : i32
    %c0_i32_0 = arith.constant 0 : i32
    %c0_i32_1 = arith.constant 0 : i32
    return %arg0, %c0_i32, %arg1, %c0_i32_0 : i32, i32, i32, i32
  }
  func.func @transform_1(%arg0: i32, %arg1: i32) -> (i32, i32, i32) {
    %c0_i32 = arith.constant 0 : i32
    %c0_i32_0 = arith.constant 0 : i32
    return %arg0, %arg1, %c0_i32 : i32, i32, i32
  }
}

</mosaic_0001>

<llo_original>
// kernel: tpu_custom_call.1
$region0: #{tpu_custom_call.1}
  #allocation0 [shape = 'u32[]', space=smem, size = 0x4, offset = 0x4, fixed_abs, tag = 'smem constant byte address 0x4 - core index']
  #allocation1 [shape = 'u32[144,128]{1,0:T(1,128)}', space=vmem, size = 0x12000, scoped, tag = 'internal scratch']
  %s0 = inlined_call_operand.hbm [shape: f32[2,4,2,128], index: 0, kind: input, shape index: {}]
  %s1 = inlined_call_operand.hbm [shape: f32[2,2,128], index: 1, kind: output, shape index: {}]
  %s2 = sld [smem:[#allocation0]]
  $region41: #{tpu_custom_call.1} parent=0
    _
  %s4 = ssub.s32 1, %s2
  %s5 = scalar_select 0, %s4, %s2
  $region1: #{tpu_custom_call.1} parent=0
    #allocation2 [shape = 'u8[8192]{0}', space=vmem, size = 0x2000, scoped, tag = 'input window, operand 0']
    #allocation3 [shape = 's32[2]{0}', space=sflag, size = 0x8, scoped, tag = 'scoped memory for tpu_custom_call.1']
    #allocation4 [shape = 's32[2]{0}', space=sflag, size = 0x8, scoped, tag = 'scoped memory for tpu_custom_call.1']
    #allocation5 [shape = 'u8[2048]{0}', space=vmem, size = 0x800, scoped, tag = 'output window, operand 0']
    %6 = vsyncpa [#allocation3], 0
    %s7 = scalar_lea.sflag [#allocation3], 1
    %8 = vsyncpa %s7, 0
    %9 = vsyncpa [#allocation4], 0
    %s10 = scalar_lea.sflag [#allocation4], 1
    %11 = vsyncpa %s10, 0
    loop: start=0, step=1, limit=4
    $region2: #{tpu_custom_call.1} parent=1 // loop_pre_header
      _
    $region3: #{tpu_custom_call.1} parent=1 // loop_header
      %s13 = sphi 0, %s17
      %p14 = scmp.ge.s32.totalorder %s13, 4
      %s20 = sphi 0, %s32
      %s21 = sphi 0, %s28
      %s22 = sphi 0, %s20
      %s23 = sphi 0, %s21
      %s24 = sphi 0, %s22
      %s25 = sphi 0, %s23
      %s37 = sphi 0, %s39
      %s40 = sphi 0, %s37
      %s41 = sphi 0, %s40
      %s57 = sphi 0, %s41
      %s65 = sphi 0, %s67
      %s68 = sphi 0, %s65
      %s69 = sphi 0, %s68
      %s85 = sphi 0, %s69
    $region4: #{tpu_custom_call.1} parent=1 // loop_header_branch
      %16 = sbr.rel (%p14) target = $region8
    $region5: #{tpu_custom_call.1} parent=1 // loop_body
      %s18 = ssub.s32 %s13, 1
      %s19 = ssub.s32 %s13, 2
      %s26 = sadd.s32 1, %s21
      %p27 = scmp.ge.s32.totalorder %s26, 1
      %s28 = scalar_select %p27, 0, %s26
      %s29 = sadd.s32 1, %s20
      %s30 = scalar_select %p27, %s29, %s20
      %p31 = scmp.ge.s32.totalorder %s30, 2
      %s32 = scalar_select %p31, 0, %s30
      %s33 = ssub.s32 %s20, %s32
      %s34 = ssub.s32 %s21, %s28
      %s35 = sor.u32 %s33, %s34
      %p36 = scmp.eq.s32.totalorder %s35, 0
      %s38 = sadd.s32 %s37, 1
      %s39 = scalar_select %p36, %s37, %s38
      %p42 = pneg %p36
      %p43 = scmp.eq.s32.totalorder %s13, 1
      %p44 = por %p42, %p43
      %p45 = scmp.ne.s32.totalorder %s37, %s40
      %p46 = scmp.eq.s32.totalorder %s13, 0
      %p47 = por %p45, %p46
      %p48 = scmp.ne.s32.totalorder %s37, %s40
      %p49 = scmp.eq.s32.totalorder %s18, 1
      %p50 = por %p48, %p49
      %p51 = scmp.ne.s32.totalorder %s40, %s41
      %p52 = scmp.eq.s32.totalorder %s18, 0
      %p53 = por %p51, %p52
      %p54 = scmp.ne.s32.totalorder %s40, %s41
      %p55 = scmp.eq.s32.totalorder %s19, 1
      %p56 = por %p54, %p55
      %p58 = scmp.ne.s32.totalorder %s41, %s57
      %p59 = scmp.eq.s32.totalorder %s19, 0
      %p60 = por %p58, %p59
      %s61 = ssub.s32 %s20, %s32
      %s62 = ssub.s32 %s21, %s28
      %s63 = sor.u32 %s61, %s62
      %p64 = scmp.eq.s32.totalorder %s63, 0
      %s66 = sadd.s32 %s65, 1
      %s67 = scalar_select %p64, %s65, %s66
      %p70 = pneg %p64
      %p71 = scmp.eq.s32.totalorder %s13, 1
      %p72 = por %p70, %p71
      %p73 = scmp.ne.s32.totalorder %s65, %s68
      %p74 = scmp.eq.s32.totalorder %s13, 0
      %p75 = por %p73, %p74
      %p76 = scmp.ne.s32.totalorder %s65, %s68
      %p77 = scmp.eq.s32.totalorder %s18, 1
      %p78 = por %p76, %p77
      %p79 = scmp.ne.s32.totalorder %s68, %s69
      %p80 = scmp.eq.s32.totalorder %s18, 0
      %p81 = por %p79, %p80
      %p82 = scmp.ne.s32.totalorder %s68, %s69
      %p83 = scmp.eq.s32.totalorder %s19, 1
      %p84 = por %p82, %p83
      %p86 = scmp.ne.s32.totalorder %s69, %s85
      %p87 = scmp.eq.s32.totalorder %s19, 0
      %p88 = por %p86, %p87
      %p89 = scmp.le.s32.totalorder 1, %s13
      %p90 = scmp.lt.s32.totalorder %s13, 3
      %p91 = pnand %p89, %p90
      %p92 = pneg %p91
      // Predicated region
      $region9: #{tpu_custom_call.1} parent=5 // pred_check
        _
      $region10: #{tpu_custom_call.1} parent=5 // pred_check_branch
        %94 = sbr.rel (%p91) target = $region12
      $region11: #{tpu_custom_call.1} parent=5 // pred_region
        %s95 = ssub.s32 %s13, 1
      $region12: #{tpu_custom_call.1} parent=5 // pred_fallthru
        _
      %p96 = scmp.lt.s32.totalorder %s13, 2
      // Predicated region
      $region13: #{tpu_custom_call.1} parent=5 // pred_check
        %p97 = pneg %p96
      $region14: #{tpu_custom_call.1} parent=5 // pred_check_branch
        %99 = sbr.rel (%p97) target = $region16
      $region15: #{tpu_custom_call.1} parent=5 // pred_region
        // Predicated region
        $region17: #{tpu_custom_call.1} parent=15 // pred_check
          %p100 = pneg %p47
        $region18: #{tpu_custom_call.1} parent=15 // pred_check_branch
          %102 = sbr.rel (%p100) target = $region20
        $region19: #{tpu_custom_call.1} parent=15 // pred_region
          %s103 = sand.u32 %s37, 1
          %s104 = scalar_lea.sflag [#allocation3], %s103
          %s105 = sand.u32 %s37, 1
          %s106 = smul.addr %s105, 8
          %s107 = scalar_lea.vmem [#allocation2], %s106
          %s109 = ssub.s32 128, 128
          %110 = vsyncadd %s104, %s109
          %s111 = smul.addr %s20, 4
          %s112 = sadd.s32 %s21, %s111
          %s113 = smul.addr %s112, 32
          %s114 = scalar_lea.hbm %s0, %s113
          %s115 = sshll.u32 %s107, 4
          %s116 = int_to_ptr.vmem [resolvable:$true] %s115
          %121 = dma.hbm_to_vmem [thread:$0]  %s114, 128, %s116, %s104, 32, 32, 2
        $region20: #{tpu_custom_call.1} parent=15 // pred_fallthru
          _
      $region16: #{tpu_custom_call.1} parent=5 // pred_fallthru
        _
      %p122 = scmp.le.s32.totalorder 1, %s13
      %p123 = scmp.lt.s32.totalorder %s13, 3
      %p124 = pnand %p122, %p123
      %p125 = pneg %p124
      // Predicated region
      $region21: #{tpu_custom_call.1} parent=5 // pred_check
        _
      $region22: #{tpu_custom_call.1} parent=5 // pred_check_branch
        %127 = sbr.rel (%p124) target = $region24
      $region23: #{tpu_custom_call.1} parent=5 // pred_region
        %s128 = ssub.s32 %s13, 1
        %s129 = sand.u32 %s40, 1
        %s130 = scalar_lea.sflag [#allocation3], %s129
        %s131 = sand.u32 %s40, 1
        %s132 = smul.addr %s131, 8
        %s133 = scalar_lea.vmem [#allocation2], %s132
        // Predicated region
        $region25: #{tpu_custom_call.1} parent=23 // pred_check
          %p134 = pneg %p53
        $region26: #{tpu_custom_call.1} parent=23 // pred_check_branch
          %136 = sbr.rel (%p134) target = $region28
        $region27: #{tpu_custom_call.1} parent=23 // pred_region
          %137 = dma.done %s130, 128
        $region28: #{tpu_custom_call.1} parent=23 // pred_fallthru
          _
        %s138 = sand.u32 %s40, 1
        %s139 = scalar_lea.sflag [#allocation3], %s138
        %s140 = sand.u32 %s40, 1
        %s141 = smul.addr %s140, 8
        %s142 = scalar_lea.vmem [#allocation2], %s141
        %p143 = pneg %p53
        %p144 = pneg %p50
        %p145 = pneg %p81
        %p146 = pneg %p78
        %s147 = sand.u32 %s68, 1
        %s148 = scalar_lea.sflag [#allocation4], %s147
        %s149 = sand.u32 %s68, 1
        %s150 = smul.addr %s149, 2
        %s151 = scalar_lea.vmem [#allocation5], %s150
        %v152 = vld [vmem:[%s133] sm:$0x3]
        %s153 = scalar_lea.vmem %s133, 2 [#allocation2]
        %v154 = vld [vmem:[%s153] sm:$0x3]
        %vm155 = vcmp.gt.f32.partialorder %v154, %v152
        %v156 = vsel %vm155, %v154, %v152
        %v157 = vsel %vm155, 1.0, 0.0
        %s158 = scalar_lea.vmem %s133, 4 [#allocation2]
        %v159 = vld [vmem:[%s158] sm:$0x3]
        %vm160 = vcmp.gt.f32.partialorder %v159, %v156
        %v161 = vsel %vm160, %v159, %v156
        %v162 = vsel %vm160, 2.0, %v157
        %s163 = scalar_lea.vmem %s133, 6 [#allocation2]
        %v164 = vld [vmem:[%s163] sm:$0x3]
        %vm165 = vcmp.gt.f32.partialorder %v164, %v161
        %v166 = vsel %vm165, 3.0, %v162
        %167 = vst [vmem:[%s151] sm:$0x3] %v166
        %s168 = sand.u32 %s68, 1
        %s169 = scalar_lea.sflag [#allocation4], %s168
        %s170 = sand.u32 %s68, 1
        %s171 = smul.addr %s170, 2
        %s172 = scalar_lea.vmem [#allocation5], %s171
        // Predicated region
        $region29: #{tpu_custom_call.1} parent=23 // pred_check
          %p173 = pneg %p78
        $region30: #{tpu_custom_call.1} parent=23 // pred_check_branch
          %175 = sbr.rel (%p173) target = $region32
        $region31: #{tpu_custom_call.1} parent=23 // pred_region
          %s177 = ssub.s32 32, 32
          %178 = vsyncadd %s169, %s177
          %s179 = sadd.s32 %s23, %s22
          %s180 = smul.addr %s179, 32
          %s181 = scalar_lea.hbm %s1, %s180
          %s183 = sshll.u32 %s172, 4
          %s184 = int_to_ptr.vmem [resolvable:$true] %s183
          %186 = dma.vmem_to_hbm [thread:$0]  %s184, 32, %s181, %s169
        $region32: #{tpu_custom_call.1} parent=23 // pred_fallthru
          _
      $region24: #{tpu_custom_call.1} parent=5 // pred_fallthru
        _
      %p187 = scmp.le.s32.totalorder 2, %s13
      // Predicated region
      $region33: #{tpu_custom_call.1} parent=5 // pred_check
        %p188 = pneg %p187
      $region34: #{tpu_custom_call.1} parent=5 // pred_check_branch
        %190 = sbr.rel (%p188) target = $region36
      $region35: #{tpu_custom_call.1} parent=5 // pred_region
        %s191 = ssub.s32 %s13, 2
        // Predicated region
        $region37: #{tpu_custom_call.1} parent=35 // pred_check
          %p192 = pneg %p84
        $region38: #{tpu_custom_call.1} parent=35 // pred_check_branch
          %194 = sbr.rel (%p192) target = $region40
        $region39: #{tpu_custom_call.1} parent=35 // pred_region
          %s195 = sand.u32 %s69, 1
          %s196 = scalar_lea.sflag [#allocation4], %s195
          %s197 = sand.u32 %s69, 1
          %s198 = smul.addr %s197, 2
          %s199 = scalar_lea.vmem [#allocation5], %s198
          %200 = dma.done %s196, 32
        $region40: #{tpu_custom_call.1} parent=35 // pred_fallthru
          _
      $region36: #{tpu_custom_call.1} parent=5 // pred_fallthru
        _
    $region6: #{tpu_custom_call.1} parent=1 // loop_footer
      %s17 = sadd.s32 1, %s13
    $region7: #{tpu_custom_call.1} parent=1 // loop_footer_branch
      %12 = sbr.rel target = $region3
    $region8: #{tpu_custom_call.1} parent=1 // loop_exit
      _
    %201 = vsyncpa [#allocation3], 1
    %s202 = scalar_lea.sflag [#allocation3], 1
    %203 = vsyncpa %s202, 1
    %204 = vsyncpa [#allocation4], 1
    %s205 = scalar_lea.sflag [#allocation4], 1
    %206 = vsyncpa %s205, 1

</llo_original>
